<compile_context>
chip_gen: v6e
topology: v6e:2x2x1
jax: 0.10.0
libtpu: 0.0.40
codegen_flags: <defaults>
</compile_context>

<pallas_src>
import math
import functools

import jax
import jax.numpy as jnp
from jax.experimental import pallas as pl
from jax.experimental.pallas import tpu as pltpu


# ----------------------------------------------------------------------------
# Generation-aware tile targets
# ----------------------------------------------------------------------------
def _vmem_capacity_bytes():
    try:
        return int(pltpu.get_tpu_info().vmem_capacity_bytes)
    except Exception:
        return 64 * 1024 * 1024          # conservative: v7x per-TC VMEM

_VMEM_CAP = _vmem_capacity_bytes()
if _VMEM_CAP >= 96 * 1024 * 1024:        # v5e / v6e class parts (128 MiB VMEM)
    TOKEN_TILE_TARGET = 256
    HIDDEN_TILE_TARGET = 512
    VMEM_LIMIT_BYTES = 100 * 1024 * 1024
else:                                    # v7x class (64 MiB per-TC): leave headroom
    TOKEN_TILE_TARGET = 256
    HIDDEN_TILE_TARGET = 256
    VMEM_LIMIT_BYTES = 50 * 1024 * 1024
GATE_TOKEN_TILE_TARGET = 256


def _pick_tile(full, target, align):
    """Largest tile <= target that divides `full` and is `align`-aligned.

    Falls back to the full dimension (always legal: block == full extent)."""
    if full <= target:
        return full
    t = (target // align) * align
    while t >= align:
        if full % t == 0:
            return t
        t -= align
    return full


# ----------------------------------------------------------------------------
# Pallas kernels
# ----------------------------------------------------------------------------
def _gate_kernel(x_ref, wg_ref, scores_ref):
    # x: (tn, D) f32, wg: (D, E) f32 -> scores: (tn, E) row-wise softmax (exact under token tiling)
    logits = jnp.dot(x_ref[...], wg_ref[...], preferred_element_type=jnp.float32)
    scores_ref[...] = jax.nn.softmax(logits, axis=-1)


def _moe_expert_kernel(fid_ref, hsel_ref, hpin_ref,
                       x_ref, w1_ref, w3_ref, w2_ref, coef_ref,
                       o_ref, acc_ref):
    # grid = (token_tiles, experts, h_tiles); acc_ref: (tn, D) f32 VMEM scratch.
    t = pl.program_id(0)
    e = pl.program_id(1)
    h = pl.program_id(2)
    n_e = pl.num_programs(1)
    n_h = pl.num_programs(2)

    @pl.when(jnp.logical_and(e == 0, h == 0))
    def _init():
        acc_ref[...] = jnp.zeros_like(acc_ref)

    # Active iff this (token tile, expert) has routed tokens.  Skipping is
    # exact because dropped/unrouted tokens carry exactly-zero coefficients.
    # (Weight DMAs for inactive pairs are elided via the index maps, not here.)
    @pl.when(hsel_ref[t * n_e + e] > 0)
    def _compute():
        x = x_ref[...]                                                   # (tn, D)  bf16
        h1 = jnp.dot(x, w1_ref[0], preferred_element_type=jnp.float32)  # (tn, th) f32
        h3 = jnp.dot(x, w3_ref[0], preferred_element_type=jnp.float32)  # (tn, th) f32
        # Routing coef folded into the (tn, th) gate activation: commutes with
        # the row-wise W2 matmul and is ~D/th cheaper than scaling the output.
        g = (jax.nn.silu(h1) * h3 * coef_ref[0]).astype(jnp.bfloat16)
        acc_ref[...] += jnp.dot(g, w2_ref[0], preferred_element_type=jnp.float32)

    @pl.when(jnp.logical_and(e == n_e - 1, h == n_h - 1))
    def _finalize():
        o_ref[...] = acc_ref[...].astype(o_ref.dtype)


# ----------------------------------------------------------------------------
# Pallas wrappers
# ----------------------------------------------------------------------------
def gate_scores(flat, wg_t):
    """softmax(flat @ wg_t) computed tile-by-tile over tokens."""
    N, D = flat.shape
    E = wg_t.shape[1]
    tn = _pick_tile(N, GATE_TOKEN_TILE_TARGET, 8)
    # NOTE: E < 128 means masked partial stores on the output; acceptable, the
    # gate is tiny relative to the expert FFNs.
    return pl.pallas_call(
        _gate_kernel,
        out_shape=jax.ShapeDtypeStruct((N, E), jnp.float32),
        grid_spec=pltpu.PrefetchScalarGridSpec(
            num_scalar_prefetch=0,
            grid=(N // tn,),
            in_specs=[
                pl.BlockSpec((tn, D), lambda i: (i, 0)),
                pl.BlockSpec((D, E), lambda i: (0, 0)),     # resident
            ],
            out_specs=pl.BlockSpec((tn, E), lambda i: (i, 0)),
        ),
        compiler_params=pltpu.CompilerParams(
            dimension_semantics=("parallel",),
            vmem_limit_bytes=VMEM_LIMIT_BYTES,
        ),
    )(flat, wg_t)


def moe_experts_apply(flat_bf16, w1s, w3s, w2s, coef, out_dtype):
    """out[n] = sum_e coef[e, n] * SwiGLU_e(flat[n]).

    flat_bf16 : (N, D) bf16
    w1s/w3s   : (E_total, D, H) bf16
    w2s       : (E_total, H, D) bf16
    coef      : (E_total, N, 1) f32   (zero entries = token not routed / dropped)
    """
    N, D = flat_bf16.shape
    E_total, _, H = w1s.shape

    tn = _pick_tile(N, TOKEN_TILE_TARGET, 128 if N >= 128 else 8)
    th = _pick_tile(H, HIDDEN_TILE_TARGET, 128)
    t_tiles = N // tn
    h_tiles = H // th

    # --- per-(token-tile, expert) DMA-redirect tables (flat 1-D, SMEM-prefetched)
    # fid[t,e]  : expert whose weight chunk the index map should request.
    #             == e for active pairs; for inactive pairs it points at the
    #             previously-fetched active expert (block index repeats ->
    #             Pallas elides the DMA) or forward at the next active expert
    #             (free prefetch at the start of a tile).
    # hsel[t,e] : 1 -> use the grid h index, 0 -> use hpin[t,e].
    # hpin[t,e] : pinned h chunk for inactive pairs (last chunk of the previous
    #             active expert, or 0 when pointing forward).
    active = (jnp.abs(coef[..., 0]) > 0)                            # (E_total, N)
    active = active.reshape(E_total, t_tiles, tn).any(axis=-1).T    # (t_tiles, E_total)
    e_ids = jnp.broadcast_to(jnp.arange(E_total, dtype=jnp.int32)[None, :], active.shape)
    prev_a = jax.lax.cummax(jnp.where(active, e_ids, -1), axis=1)
    next_a = jax.lax.cummin(jnp.where(active, e_ids, E_total), axis=1, reverse=True)
    has_prev = prev_a >= 0
    fid = jnp.where(active, e_ids, jnp.where(has_prev, prev_a, next_a))
    fid = jnp.clip(fid, 0, E_total - 1).astype(jnp.int32).reshape(-1)
    hsel = active.astype(jnp.int32).reshape(-1)
    hpin = jnp.where(active, 0,
                     jnp.where(has_prev, h_tiles - 1, 0)).astype(jnp.int32).reshape(-1)

    # Index maps use only scalar int multiply/add on the prefetched tables.
    def _w13_map(t, e, h, fid_r, hsel_r, hpin_r):
        i = t * E_total + e
        return (fid_r[i], 0, hsel_r[i] * h + hpin_r[i])

    def _w2_map(t, e, h, fid_r, hsel_r, hpin_r):
        i = t * E_total + e
        return (fid_r[i], hsel_r[i] * h + hpin_r[i], 0)

    return pl.pallas_call(
        _moe_expert_kernel,
        out_shape=jax.ShapeDtypeStruct((N, D), out_dtype),
        grid_spec=pltpu.PrefetchScalarGridSpec(
            num_scalar_prefetch=3,                                # fid, hsel, hpin
            grid=(t_tiles, E_total, h_tiles),
            in_specs=[
                # token tile, resident across the expert and H axes
                pl.BlockSpec((tn, D), lambda t, e, h, *_: (t, 0)),
                # per-expert weight chunks (H tiled), DMA-elided when inactive
                pl.BlockSpec((1, D, th), _w13_map),
                pl.BlockSpec((1, D, th), _w13_map),
                pl.BlockSpec((1, th, D), _w2_map),
                # per-token routing coefficient tile (tiny: tn*4 bytes of HBM)
                pl.BlockSpec((1, tn, 1), lambda t, e, h, *_: (e, t, 0)),
            ],
            # output written once per token tile from the f32 scratch accumulator
            out_specs=pl.BlockSpec((tn, D), lambda t, e, h, *_: (t, 0)),
            scratch_shapes=[pltpu.VMEM((tn, D), jnp.float32)],
        ),
        compiler_params=pltpu.CompilerParams(
            dimension_semantics=("parallel", "arbitrary", "arbitrary"),
            vmem_limit_bytes=VMEM_LIMIT_BYTES,
        ),
    )(fid, hsel, hpin, flat_bf16, w1s, w3s, w2s, coef)


# ----------------------------------------------------------------------------
# Full MoE forward (single device: world_size == 1, rank == 0)
# ----------------------------------------------------------------------------
@functools.partial(jax.jit,
                   static_argnames=("n_routed", "top_k", "route_scale", "debug_aux"))
def moe_forward(x, params, *, n_routed, top_k, route_scale, debug_aux=False):
    B, T, D = x.shape
    N = B * T
    flat = x.reshape(N, D)

    wg_t = params["gate_wt"]                       # (D, E)  pre-transposed at init
    bias = params["gate_bias"]                     # (E,)
    w1s, w3s, w2s = params["w1"], params["w3"], params["w2"]   # pre-stacked bf16
    E = n_routed
    E_total = w1s.shape[0]
    n_shared = E_total - n_routed

    # ---- gate (Pallas, token-tiled) ----
    scores = gate_scores(flat, wg_t)               # (N, E) softmax, f32
    sel = scores + bias[None, :]                   # bias only affects selection
    _, topi = jax.lax.top_k(sel, top_k)            # (N, K)
    # mixing weights come from the (pre-bias) softmax scores, DeepSeek-V3 style
    weights = jnp.take_along_axis(scores, topi, axis=1) * route_scale

    # ---- capacity-limited dense routing coefficients (plain-JAX glue) ----
    # Per-expert top-`capacity` selection (single top_k) instead of a double
    # argsort over (N, E).
    capacity = min(int(math.ceil(N * top_k / E * 1.25)), N)
    w_dense = jnp.zeros((N, E), jnp.float32).at[
        jnp.arange(N)[:, None], topi].add(weights.astype(jnp.float32))
    assigned = (topi[:, :, None] == jnp.arange(E)[None, None, :]).any(axis=1)   # (N, E)
    vals_T = jnp.where(assigned, w_dense, -jnp.inf).T                            # (E, N)
    _, keep_idx = jax.lax.top_k(vals_T, capacity)                                # (E, cap)
    keep = jnp.zeros((E, N), dtype=bool).at[jnp.arange(E)[:, None], keep_idx].set(True)
    keep = keep & assigned.T
    coef_routed = jnp.where(keep, w_dense.T, 0.0)                                # (E, N)

    # shared experts are always-on and summed (coefficient 1.0 each)
    coef_shared = jnp.ones((n_shared, N), jnp.float32)
    coef = jnp.concatenate([coef_routed, coef_shared], axis=0)[..., None]  # (E_total, N, 1)

    # ---- experts + weighted combine (Pallas, bf16 matmuls / f32 accum) ----
    flat_bf16 = flat.astype(jnp.bfloat16)
    out = moe_experts_apply(flat_bf16, w1s, w3s, w2s, coef, out_dtype=x.dtype)
    out = out.reshape(B, T, D)
    if debug_aux:
        return out, (scores, coef, flat_bf16)
    return out


# ----------------------------------------------------------------------------
# Pure-JAX reference for the expert/combine kernel (same coef / same bf16 weights)
# ----------------------------------------------------------------------------
def _experts_reference(flat_bf16, w1s, w3s, w2s, coef):
    h1 = jnp.einsum("nd,edh->enh", flat_bf16, w1s, preferred_element_type=jnp.float32)
    h3 = jnp.einsum("nd,edh->enh", flat_bf16, w3s, preferred_element_type=jnp.float32)
    # coef folded into the gate activation before the bf16 cast, matching the kernel
    g = (jax.nn.silu(h1) * h3 * coef).astype(jnp.bfloat16)
    y = jnp.einsum("enh,ehd->end", g, w2s, preferred_element_type=jnp.float32)
    return jnp.sum(y, axis=0)                      # (N, D) f32


# ----------------------------------------------------------------------------
# Deterministic parameter init (weights pre-transposed / pre-stacked, bf16 experts)
# ----------------------------------------------------------------------------
def init_params(key, dim, hidden_dim, n_routed, n_shared):
    ks = jax.random.split(key, 5)
    s_d = 1.0 / math.sqrt(dim)
    s_h = 1.0 / math.sqrt(hidden_dim)
    e_total = n_routed + n_shared                  # routed experts first, then shared
    params = {
        "gate_wt": (jax.random.normal(ks[0], (n_routed, dim), jnp.float32) * s_d).T,
        "gate_bias": jnp.zeros((n_routed,), jnp.float32),
        "w1": (jax.random.normal(ks[1], (e_total, dim, hidden_dim), jnp.float32) * s_d
               ).astype(jnp.bfloat16),
        "w3": (jax.random.normal(ks[2], (e_total, dim, hidden_dim), jnp.float32) * s_d
               ).astype(jnp.bfloat16),
        "w2": (jax.random.normal(ks[3], (e_total, hidden_dim, dim), jnp.float32) * s_h
               ).astype(jnp.bfloat16),
    }
    return params, ks[4]


if __name__ == "__main__":
    B, T = 2, 8
    dim, hidden_dim = 32, 64
    n_routed, top_k, n_shared = 8, 2, 2
    route_scale = 1.0

    key = jax.random.PRNGKey(0)
    params, kx = init_params(key, dim, hidden_dim, n_routed, n_shared)
    x = jax.random.normal(kx, (B, T, dim), jnp.float32)

    out, (scores, coef, flat_bf16) = moe_forward(
        x, params, n_routed=n_routed, top_k=top_k,
        route_scale=route_scale, debug_aux=True)
    out = jax.block_until_ready(out)

    assert out.shape == (B, T, dim)
    assert bool(jnp.all(jnp.isfinite(out)))

    # Gate kernel cross-check (loose tolerance: matmul precision may differ).
    ref_logits = jnp.dot(x.reshape(-1, dim), params["gate_wt"],
                         precision=jax.lax.Precision.HIGHEST)
    ref_scores = jax.nn.softmax(ref_logits, axis=-1)
    assert bool(jnp.allclose(scores, ref_scores, atol=2e-2, rtol=2e-2))

    # Expert/combine kernel cross-check with the SAME coefficients: verifies the
    # skip / DMA-redirect logic and that dropped / unrouted tokens contribute 0.
    ref_out = _experts_reference(flat_bf16, params["w1"], params["w3"],
                                 params["w2"], coef)
    assert bool(jnp.allclose(out.reshape(-1, dim), ref_out, atol=2e-2, rtol=2e-2))

    print("KERNEL_OK")
</pallas_src>

<mosaic_0001>
module attributes {stable_mosaic.version = 11 : i64} {
  func.func private @main(%arg0: i32) attributes {dimension_semantics = [#tpu.dimension_semantics<core_parallel>], iteration_bounds = array<i64: 2>, tpu.core_type = #tpu.core_type<sc_scalar_subcore>, window_params = []} {
    return
  }
}

module attributes {stable_mosaic.version = 11 : i64} {
  func.func private @main(%arg0: i32) attributes {dimension_semantics = [#tpu.dimension_semantics<core_parallel>], iteration_bounds = array<i64: 2>, tpu.core_type = #tpu.core_type<sc_scalar_subcore>, window_params = []} {
    return
  }
}

module attributes {stable_mosaic.version = 11 : i64} {
  func.func @_gate_kernel(%arg0: i32, %arg1: memref<16x32xf32, #tpu.memory_space<vmem>>, %arg2: memref<32x8xf32, #tpu.memory_space<vmem>>, %arg3: memref<16x8xf32, #tpu.memory_space<vmem>>) attributes {dimension_semantics = [#tpu.dimension_semantics<parallel>], iteration_bounds = array<i64: 1>, scalar_prefetch = 0 : i64, scratch_operands = 0 : i64, tpu.core_type = #tpu.core_type<tc>, window_params = [{transform_indices = @transform_0, window_bounds = array<i64: 16, 32>}, {pipeline_mode = #tpu.pipeline_mode<synchronous>, transform_indices = @transform_1, window_bounds = array<i64: 32, 8>}, {transform_indices = @transform_2, window_bounds = array<i64: 16, 8>}]} {
    %c0 = arith.constant 0 : index
    %c0_0 = arith.constant 0 : index
    %0 = vector.load %arg1[%c0, %c0_0] : memref<16x32xf32, #tpu.memory_space<vmem>>, vector<16x32xf32>
    %c0_1 = arith.constant 0 : index
    %c0_2 = arith.constant 0 : index
    %1 = vector.load %arg2[%c0_1, %c0_2] : memref<32x8xf32, #tpu.memory_space<vmem>>, vector<32x8xf32>
    %cst = arith.constant dense<0.000000e+00> : vector<16x8xf32>
    %2 = tpu.matmul %0, %1, %cst {dimension_numbers = #tpu.dot_dimension_numbers<[1], [0], [0], [1], [0, 0, 1, 1], [], []>} : vector<16x32xf32>, vector<32x8xf32>, vector<16x8xf32> -> vector<16x8xf32>
    %cst_3 = arith.constant dense<0xFF800000> : vector<16xf32>
    %3 = vector.multi_reduction <maximumf>, %2, %cst_3 [1] : vector<16x8xf32> to vector<16xf32>
    %cst_4 = arith.constant 0xFF800000 : f32
    %4 = vector.broadcast %cst_4 : f32 to vector<16xf32>
    %5 = arith.maximumf %4, %3 : vector<16xf32>
    %6 = vector.shape_cast %5 : vector<16xf32> to vector<16x1xf32>
    %7 = vector.broadcast %6 : vector<16x1xf32> to vector<16x8xf32>
    %8 = arith.subf %2, %7 : vector<16x8xf32>
    %9 = math.exp %8 : vector<16x8xf32>
    %cst_5 = arith.constant dense<0.000000e+00> : vector<16xf32>
    %10 = vector.multi_reduction <add>, %9, %cst_5 [1] : vector<16x8xf32> to vector<16xf32>
    %11 = vector.shape_cast %10 : vector<16xf32> to vector<16x1xf32>
    %12 = vector.broadcast %11 : vector<16x1xf32> to vector<16x8xf32>
    %13 = arith.divf %9, %12 : vector<16x8xf32>
    %c0_6 = arith.constant 0 : index
    %c0_7 = arith.constant 0 : index
    %14 = vector.load %arg3[%c0_6, %c0_7] : memref<16x8xf32, #tpu.memory_space<vmem>>, vector<16x8xf32>
    tpu.vector_store %arg3[%c0_6, %c0_7], %13 {strides = array<i32>} : memref<16x8xf32, #tpu.memory_space<vmem>>, vector<16x8xf32>,
    return
  }
  func.func @transform_0(%arg0: i32) -> (i32, i32) {
    %c0_i32 = arith.constant 0 : i32
    %c0_i32_0 = arith.constant 0 : i32
    return %arg0, %c0_i32 : i32, i32
  }
  func.func @transform_1(%arg0: i32) -> (i32, i32) {
    %c0_i32 = arith.constant 0 : i32
    %c0_i32_0 = arith.constant 0 : i32
    %c0_i32_1 = arith.constant 0 : i32
    return %c0_i32, %c0_i32_0 : i32, i32
  }
  func.func @transform_2(%arg0: i32) -> (i32, i32) {
    %c0_i32 = arith.constant 0 : i32
    %c0_i32_0 = arith.constant 0 : i32
    return %arg0, %c0_i32 : i32, i32
  }
}

module attributes {stable_mosaic.version = 11 : i64} {
  func.func @_moe_expert_kernel(%arg0: i32, %arg1: i32, %arg2: i32, %arg3: memref<10xi32, #tpu.memory_space<smem>>, %arg4: memref<10xi32, #tpu.memory_space<smem>>, %arg5: memref<10xi32, #tpu.memory_space<smem>>, %arg6: memref<16x32xbf16, #tpu.memory_space<vmem>>, %arg7: memref<1x32x64xbf16, #tpu.memory_space<vmem>>, %arg8: memref<1x32x64xbf16, #tpu.memory_space<vmem>>, %arg9: memref<1x64x32xbf16, #tpu.memory_space<vmem>>, %arg10: memref<1x16x1xf32, #tpu.memory_space<vmem>>, %arg11: memref<16x32xf32, #tpu.memory_space<vmem>>, %arg12: memref<16x32xf32, #tpu.memory_space<vmem>>) attributes {dimension_semantics = [#tpu.dimension_semantics<parallel>, #tpu.dimension_semantics<arbitrary>, #tpu.dimension_semantics<arbitrary>], iteration_bounds = array<i64: 1, 10, 1>, scalar_prefetch = 3 : i64, scratch_operands = 1 : i64, tpu.core_type = #tpu.core_type<tc>, window_params = [{transform_indices = @transform_0, window_bounds = array<i64: 16, 32>}, {transform_indices = @transform_1, window_bounds = array<i64: 1, 32, 64>}, {transform_indices = @transform_2, window_bounds = array<i64: 1, 32, 64>}, {transform_indices = @transform_3, window_bounds = array<i64: 1, 64, 32>}, {transform_indices = @transform_4, window_bounds = array<i64: 1, 16, 1>}, {transform_indices = @transform_5, window_bounds = array<i64: 16, 32>}]} {
    %c0_i32 = arith.constant 0 : i32
    %0 = arith.cmpi eq, %arg1, %c0_i32 : i32
    %c0_i32_0 = arith.constant 0 : i32
    %1 = arith.cmpi eq, %arg2, %c0_i32_0 : i32
    %2 = arith.andi %0, %1 : i1
    %3 = arith.extui %2 : i1 to i32
    %c0_i32_1 = arith.constant 0 : i32
    %4 = arith.cmpi ne, %3, %c0_i32_1 : i32
    scf.if %4 {
      %cst = arith.constant 0.000000e+00 : f32
      %17 = vector.broadcast %cst : f32 to vector<16x32xf32>
      %c0 = arith.constant 0 : index
      %c0_6 = arith.constant 0 : index
      %18 = vector.load %arg12[%c0, %c0_6] : memref<16x32xf32, #tpu.memory_space<vmem>>, vector<16x32xf32>
      tpu.vector_store %arg12[%c0, %c0_6], %17 {strides = array<i32>} : memref<16x32xf32, #tpu.memory_space<vmem>>, vector<16x32xf32>,
    } else {
    }
    %c10_i32 = arith.constant 10 : i32
    %5 = arith.muli %arg0, %c10_i32 : i32
    %6 = arith.addi %5, %arg1 : i32
    %7 = arith.index_cast %6 : i32 to index
    %8 = memref.load %arg4[%7] : memref<10xi32, #tpu.memory_space<smem>>
    %c0_i32_2 = arith.constant 0 : i32
    %9 = arith.cmpi sgt, %8, %c0_i32_2 : i32
    %10 = arith.extui %9 : i1 to i32
    %c0_i32_3 = arith.constant 0 : i32
    %11 = arith.cmpi ne, %10, %c0_i32_3 : i32
    scf.if %11 {
      %c0 = arith.constant 0 : index
      %c0_6 = arith.constant 0 : index
      %17 = vector.load %arg6[%c0, %c0_6] : memref<16x32xbf16, #tpu.memory_space<vmem>>, vector<16x32xbf16>
      %c0_7 = arith.constant 0 : index
      %c0_8 = arith.constant 0 : index
      %c0_9 = arith.constant 0 : index
      %18 = vector.load %arg7[%c0_7, %c0_8, %c0_9] : memref<1x32x64xbf16, #tpu.memory_space<vmem>>, vector<1x32x64xbf16>
      %19 = vector.shape_cast %18 : vector<1x32x64xbf16> to vector<32x64xbf16>
      %cst = arith.constant dense<0.000000e+00> : vector<16x64xf32>
      %20 = tpu.matmul %17, %19, %cst {dimension_numbers = #tpu.dot_dimension_numbers<[1], [0], [0], [1], [0, 0, 1, 1], [], []>} : vector<16x32xbf16>, vector<32x64xbf16>, vector<16x64xf32> -> vector<16x64xf32>
      %c0_10 = arith.constant 0 : index
      %c0_11 = arith.constant 0 : index
      %c0_12 = arith.constant 0 : index
      %21 = vector.load %arg8[%c0_10, %c0_11, %c0_12] : memref<1x32x64xbf16, #tpu.memory_space<vmem>>, vector<1x32x64xbf16>
      %22 = vector.shape_cast %21 : vector<1x32x64xbf16> to vector<32x64xbf16>
      %cst_13 = arith.constant dense<0.000000e+00> : vector<16x64xf32>
      %23 = tpu.matmul %17, %22, %cst_13 {dimension_numbers = #tpu.dot_dimension_numbers<[1], [0], [0], [1], [0, 0, 1, 1], [], []>} : vector<16x32xbf16>, vector<32x64xbf16>, vector<16x64xf32> -> vector<16x64xf32>
      %24 = arith.negf %20 : vector<16x64xf32>
      %25 = math.exp %24 : vector<16x64xf32>
      %cst_14 = arith.constant 1.000000e+00 : f32
      %26 = vector.broadcast %cst_14 : f32 to vector<16x64xf32>
      %27 = arith.addf %26, %25 : vector<16x64xf32>
      %28 = arith.divf %26, %27 : vector<16x64xf32>
      %29 = arith.mulf %20, %28 : vector<16x64xf32>
      %30 = arith.mulf %29, %23 : vector<16x64xf32>
      %c0_15 = arith.constant 0 : index
      %c0_16 = arith.constant 0 : index
      %c0_17 = arith.constant 0 : index
      %31 = vector.load %arg10[%c0_15, %c0_16, %c0_17] : memref<1x16x1xf32, #tpu.memory_space<vmem>>, vector<1x16x1xf32>
      %32 = vector.shape_cast %31 : vector<1x16x1xf32> to vector<16x1xf32>
      %33 = vector.broadcast %32 : vector<16x1xf32> to vector<16x64xf32>
      %34 = arith.mulf %30, %33 : vector<16x64xf32>
      %35 = arith.truncf %34 : vector<16x64xf32> to vector<16x64xbf16>
      %c0_18 = arith.constant 0 : index
      %c0_19 = arith.constant 0 : index
      %36 = vector.load %arg12[%c0_18, %c0_19] : memref<16x32xf32, #tpu.memory_space<vmem>>, vector<16x32xf32>
      %c0_20 = arith.constant 0 : index
      %c0_21 = arith.constant 0 : index
      %c0_22 = arith.constant 0 : index
      %37 = vector.load %arg9[%c0_20, %c0_21, %c0_22] : memref<1x64x32xbf16, #tpu.memory_space<vmem>>, vector<1x64x32xbf16>
      %38 = vector.shape_cast %37 : vector<1x64x32xbf16> to vector<64x32xbf16>
      %cst_23 = arith.constant dense<0.000000e+00> : vector<16x32xf32>
      %39 = tpu.matmul %35, %38, %cst_23 {dimension_numbers = #tpu.dot_dimension_numbers<[1], [0], [0], [1], [0, 0, 1, 1], [], []>} : vector<16x64xbf16>, vector<64x32xbf16>, vector<16x32xf32> -> vector<16x32xf32>
      %40 = arith.addf %36, %39 : vector<16x32xf32>
      %c0_24 = arith.constant 0 : index
      %c0_25 = arith.constant 0 : index
      %41 = vector.load %arg12[%c0_24, %c0_25] : memref<16x32xf32, #tpu.memory_space<vmem>>, vector<16x32xf32>
      tpu.vector_store %arg12[%c0_24, %c0_25], %40 {strides = array<i32>} : memref<16x32xf32, #tpu.memory_space<vmem>>, vector<16x32xf32>,
    } else {
    }
    %c9_i32 = arith.constant 9 : i32
    %12 = arith.cmpi eq, %arg1, %c9_i32 : i32
    %c0_i32_4 = arith.constant 0 : i32
    %13 = arith.cmpi eq, %arg2, %c0_i32_4 : i32
    %14 = arith.andi %12, %13 : i1
    %15 = arith.extui %14 : i1 to i32
    %c0_i32_5 = arith.constant 0 : i32
    %16 = arith.cmpi ne, %15, %c0_i32_5 : i32
    scf.if %16 {
      %c0 = arith.constant 0 : index
      %c0_6 = arith.constant 0 : index
      %17 = vector.load %arg12[%c0, %c0_6] : memref<16x32xf32, #tpu.memory_space<vmem>>, vector<16x32xf32>
      %c0_7 = arith.constant 0 : index
      %c0_8 = arith.constant 0 : index
      %18 = vector.load %arg11[%c0_7, %c0_8] : memref<16x32xf32, #tpu.memory_space<vmem>>, vector<16x32xf32>
      tpu.vector_store %arg11[%c0_7, %c0_8], %17 {strides = array<i32>} : memref<16x32xf32, #tpu.memory_space<vmem>>, vector<16x32xf32>,
    } else {
    }
    return
  }
  func.func @transform_0(%arg0: i32, %arg1: i32, %arg2: i32, %arg3: memref<10xi32, #tpu.memory_space<smem>>, %arg4: memref<10xi32, #tpu.memory_space<smem>>, %arg5: memref<10xi32, #tpu.memory_space<smem>>) -> (i32, i32) {
    %c0_i32 = arith.constant 0 : i32
    %c0_i32_0 = arith.constant 0 : i32
    return %arg0, %c0_i32 : i32, i32
  }
  func.func @transform_1(%arg0: i32, %arg1: i32, %arg2: i32, %arg3: memref<10xi32, #tpu.memory_space<smem>>, %arg4: memref<10xi32, #tpu.memory_space<smem>>, %arg5: memref<10xi32, #tpu.memory_space<smem>>) -> (i32, i32, i32) {
    %c10_i32 = arith.constant 10 : i32
    %0 = arith.muli %arg0, %c10_i32 : i32
    %1 = arith.addi %0, %arg1 : i32
    %2 = arith.index_cast %1 : i32 to index
    %3 = memref.load %arg3[%2] : memref<10xi32, #tpu.memory_space<smem>>
    %4 = arith.index_cast %1 : i32 to index
    %5 = memref.load %arg4[%4] : memref<10xi32, #tpu.memory_space<smem>>
    %6 = arith.muli %5, %arg2 : i32
    %7 = arith.index_cast %1 : i32 to index
    %8 = memref.load %arg5[%7] : memref<10xi32, #tpu.memory_space<smem>>
    %9 = arith.addi %6, %8 : i32
    %c0_i32 = arith.constant 0 : i32
    %c0_i32_0 = arith.constant 0 : i32
    return %3, %c0_i32, %9 : i32, i32, i32
  }
  func.func @transform_2(%arg0: i32, %arg1: i32, %arg2: i32, %arg3: memref<10xi32, #tpu.memory_space<smem>>, %arg4: memref<10xi32, #tpu.memory_space<smem>>, %arg5: memref<10xi32, #tpu.memory_space<smem>>) -> (i32, i32, i32) {
    %c10_i32 = arith.constant 10 : i32
    %0 = arith.muli %arg0, %c10_i32 : i32
    %1 = arith.addi %0, %arg1 : i32
    %2 = arith.index_cast %1 : i32 to index
    %3 = memref.load %arg3[%2] : memref<10xi32, #tpu.memory_space<smem>>
    %4 = arith.index_cast %1 : i32 to index
    %5 = memref.load %arg4[%4] : memref<10xi32, #tpu.memory_space<smem>>
    %6 = arith.muli %5, %arg2 : i32
    %7 = arith.index_cast %1 : i32 to index
    %8 = memref.load %arg5[%7] : memref<10xi32, #tpu.memory_space<smem>>
    %9 = arith.addi %6, %8 : i32
    %c0_i32 = arith.constant 0 : i32
    %c0_i32_0 = arith.constant 0 : i32
    return %3, %c0_i32, %9 : i32, i32, i32
  }
  func.func @transform_3(%arg0: i32, %arg1: i32, %arg2: i32, %arg3: memref<10xi32, #tpu.memory_space<smem>>, %arg4: memref<10xi32, #tpu.memory_space<smem>>, %arg5: memref<10xi32, #tpu.memory_space<smem>>) -> (i32, i32, i32) {
    %c10_i32 = arith.constant 10 : i32
    %0 = arith.muli %arg0, %c10_i32 : i32
    %1 = arith.addi %0, %arg1 : i32
    %2 = arith.index_cast %1 : i32 to index
    %3 = memref.load %arg3[%2] : memref<10xi32, #tpu.memory_space<smem>>
    %4 = arith.index_cast %1 : i32 to index
    %5 = memref.load %arg4[%4] : memref<10xi32, #tpu.memory_space<smem>>
    %6 = arith.muli %5, %arg2 : i32
    %7 = arith.index_cast %1 : i32 to index
    %8 = memref.load %arg5[%7] : memref<10xi32, #tpu.memory_space<smem>>
    %9 = arith.addi %6, %8 : i32
    %c0_i32 = arith.constant 0 : i32
    %c0_i32_0 = arith.constant 0 : i32
    return %3, %9, %c0_i32 : i32, i32, i32
  }
  func.func @transform_4(%arg0: i32, %arg1: i32, %arg2: i32, %arg3: memref<10xi32, #tpu.memory_space<smem>>, %arg4: memref<10xi32, #tpu.memory_space<smem>>, %arg5: memref<10xi32, #tpu.memory_space<smem>>) -> (i32, i32, i32) {
    %c0_i32 = arith.constant 0 : i32
    %c0_i32_0 = arith.constant 0 : i32
    return %arg1, %arg0, %c0_i32 : i32, i32, i32
  }
  func.func @transform_5(%arg0: i32, %arg1: i32, %arg2: i32, %arg3: memref<10xi32, #tpu.memory_space<smem>>, %arg4: memref<10xi32, #tpu.memory_space<smem>>, %arg5: memref<10xi32, #tpu.memory_space<smem>>) -> (i32, i32) {
    %c0_i32 = arith.constant 0 : i32
    %c0_i32_0 = arith.constant 0 : i32
    return %arg0, %c0_i32 : i32, i32
  }
}

</mosaic_0001>

<llo_original>
// kernel: moe_forward.2
$region0: #{moe_forward.2}
  #allocation0 [shape = 'u32[]', space=smem, size = 0x4, offset = 0x4, fixed_abs, tag = 'smem constant byte address 0x4 - core index']
  #allocation1 [shape = 'u32[144,128]{1,0:T(1,128)}', space=vmem, size = 0x12000, scoped, tag = 'internal scratch']
  %s0 = inlined_call_operand.vmem [shape: f32[16,32], index: 0, kind: input, shape index: {}]
  %s1 = inlined_call_operand.vmem [shape: f32[32,8], index: 1, kind: input, shape index: {}]
  %s2 = inlined_call_operand.vmem [shape: f32[16,8], index: 2, kind: output, shape index: {}]
  %s3 = sld [smem:[#allocation0]]
  $region18: #{moe_forward.2} parent=0
    _
  %s5 = ssub.s32 1, %s3
  %s6 = scalar_select 0, %s5, %s3
  // Predicated region
  $region2: #{moe_forward.2} parent=0 // pred_check
    _
  $region3: #{moe_forward.2} parent=0 // pred_check_branch
    %8 = sbr.rel (0) target = $region5
  $region4: #{moe_forward.2} parent=0 // pred_region
    _
  $region5: #{moe_forward.2} parent=0 // pred_fallthru
    _
  // Predicated region
  $region6: #{moe_forward.2} parent=0 // pred_check
    _
  $region7: #{moe_forward.2} parent=0 // pred_check_branch
    %10 = sbr.rel (0) target = $region9
  $region8: #{moe_forward.2} parent=0 // pred_region
    _
  $region9: #{moe_forward.2} parent=0 // pred_fallthru
    _
  %v11 = vld [vmem:[%s0] sm:$0xff]
  %v12 = vld [vmem:[%s0 + $0x8] sm:$0xff]
  %v13 = vld [vmem:[%s1] sm:$0xff]
  %v14 = vld [vmem:[%s1 + $0x8] sm:$0xff]
  %v15 = vld [vmem:[%s1 + $0x10] sm:$0xff]
  %v16 = vld [vmem:[%s1 + $0x18] sm:$0xff]
  %vm17 = vcmask 261120
  %v19 = vsel %vm17, %v11, 0
  %v22 = vsel %vm17, %v12, 0
  %24 = vmatprep.subr.mxu0 0.0
  %25 = vmatpush1.msra.mxu0 0.0
  %26 = vmatprep.subr.mxu0 0.0
  %27 = vmatpush1.msra.mxu0 0.0
  %28 = vmatprep.subr.mxu0 0.0
  %29 = vmatpush1.msra.mxu0 0.0
  %30 = vmatprep.subr.mxu0 0.0
  %31 = vmatpush1.msra.mxu0 0.0
  %32 = vmatprep.subr.mxu0 0.0
  %33 = vmatpush1.msra.mxu0 0.0
  %34 = vmatprep.subr.mxu0 0.0
  %35 = vmatpush1.msra.mxu0 0.0
  %36 = vmatprep.subr.mxu0 0.0
  %37 = vmatpush1.msra.mxu0 0.0
  %38 = vmatprep.subr.mxu0 0.0
  %39 = vmatpush1.msra.mxu0 0.0
  %40 = vmatprep.subr.mxu0 0.0
  %41 = vmatpush1.msra.mxu0 0.0
  %42 = vmatprep.subr.mxu0 0.0
  %43 = vmatpush1.msra.mxu0 0.0
  %44 = vmatprep.subr.mxu0 0.0
  %45 = vmatpush1.msra.mxu0 0.0
  %46 = vmatprep.subr.mxu0 0.0
  %47 = vmatpush1.msra.mxu0 0.0
  %48 = vmatprep.subr.mxu0 0.0
  %49 = vmatpush1.msra.mxu0 %v16
  %50 = vmatprep.subr.mxu0 0.0
  %51 = vmatpush1.msra.mxu0 %v15
  %52 = vmatprep.subr.mxu0 0.0
  %53 = vmatpush1.msra.mxu0 %v14
  %54 = vmatprep.subr.mxu0 0.0
  %55 = vmatpush1.msra.mxu0 %v13
  %56 = vmatprep.subr.mxu0 0.0
  %57 = vmatpush2.msra.mxu0 0.0
  %58 = vmatprep.subr.mxu0 0.0
  %59 = vmatpush2.msra.mxu0 0.0
  %60 = vmatprep.subr.mxu0 0.0
  %61 = vmatpush2.msra.mxu0 0.0
  %62 = vmatprep.subr.mxu0 0.0
  %63 = vmatpush2.msra.mxu0 0.0
  %64 = vmatprep.subr.mxu0 0.0
  %65 = vmatpush2.msra.mxu0 0.0
  %66 = vmatprep.subr.mxu0 0.0
  %67 = vmatpush2.msra.mxu0 0.0
  %68 = vmatprep.subr.mxu0 0.0
  %69 = vmatpush2.msra.mxu0 0.0
  %70 = vmatprep.subr.mxu0 0.0
  %71 = vmatpush2.msra.mxu0 0.0
  %72 = vmatprep.subr.mxu0 0.0
  %73 = vmatpush2.msra.mxu0 0.0
  %74 = vmatprep.subr.mxu0 0.0
  %75 = vmatpush2.msra.mxu0 0.0
  %76 = vmatprep.subr.mxu0 0.0
  %77 = vmatpush2.msra.mxu0 0.0
  %78 = vmatprep.subr.mxu0 0.0
  %79 = vmatpush2.msra.mxu0 0.0
  %80 = vmatprep.subr.mxu0 0.0
  %81 = vmatpush2.msra.mxu0 0.0
  %82 = vmatprep.subr.mxu0 0.0
  %83 = vmatpush2.msra.mxu0 0.0
  %84 = vmatprep.subr.mxu0 0.0
  %85 = vmatpush2.msra.mxu0 0.0
  %86 = vmatprep.subr.mxu0 0.0
  %87 = vmatpush2.msra.mxu0 0.0
  %88 = vmatprep.mubr.f32.mxu0 0.0
  %89 = vmatmul.mubr.f32.gmra.mxu0 %v19
  %v90 = vpop.f32.mrf.mxu0
  %v91 = vadd.f32 0.0, %v90
  %v92 = vpop.f32.mrf.mxu0
  %93 = vmatprep.mubr.f32.mxu0 0.0
  %94 = vmatmul.mubr.f32.gmra.mxu0 %v22
  %v95 = vpop.f32.mrf.mxu0
  %v96 = vadd.f32 0.0, %v95
  %v97 = vpop.f32.mrf.mxu0
  %98 = vdwg.mxu0
  %vm99 = vcmask 64512
  %v100 = vsel %vm99, %v91, -inf
  %101 = vmax.xlane.f32.xlu0 %v100
  %v102 = vpop.xlane.xlu0 %101
  %v103 = vsel %vm99, %v96, -inf
  %104 = vmax.xlane.f32.xlu0 %v103
  %v105 = vpop.xlane.xlu0 %104
  %v106 = vsub.f32 %v91, %v102
  %v107 = vsub.f32 %v96, %v105
  %v108 = vmul.f32 %v106, 1.442695
  %v109 = vpow.pop %v108
  %v110 = vmul.f32 %v107, 1.442695
  %v111 = vpow.pop %v110
  %v112 = vsel %vm99, %v109, 0.0
  %113 = vadd.xlane.f32.xlu0 %v112
  %v114 = vpop.xlane.xlu0 %113
  %v115 = vsel %vm99, %v111, 0.0
  %116 = vadd.xlane.f32.xlu0 %v115
  %v117 = vpop.xlane.xlu0 %116
  %v118 = vrcp.pop %v114
  %v119 = vmul.f32 %v109, %v118
  %v120 = vrcp.pop %v117
  %v121 = vmul.f32 %v111, %v120
  %122 = vst.msk [vmem:[%s2] sm:$0xff] %vm99, %v119
  %123 = vst.msk [vmem:[%s2 + $0x8] sm:$0xff] %vm99, %v121
  // Predicated region
  $region10: #{moe_forward.2} parent=0 // pred_check
    _
  $region11: #{moe_forward.2} parent=0 // pred_check_branch
    %125 = sbr.rel (0) target = $region13
  $region12: #{moe_forward.2} parent=0 // pred_region
    _
  $region13: #{moe_forward.2} parent=0 // pred_fallthru
    _
  // Predicated region
  $region14: #{moe_forward.2} parent=0 // pred_check
    _
  $region15: #{moe_forward.2} parent=0 // pred_check_branch
    %127 = sbr.rel (0) target = $region17
  $region16: #{moe_forward.2} parent=0 // pred_region
    _
  $region17: #{moe_forward.2} parent=0 // pred_fallthru
    _

// kernel: moe_forward.3
$region0: #{moe_forward.3}
  #allocation0 [shape = 'u32[]', space=smem, size = 0x4, offset = 0x4, fixed_abs, tag = 'smem constant byte address 0x4 - core index']
  #allocation1 [shape = 'u32[144,128]{1,0:T(1,128)}', space=vmem, size = 0x12000, scoped, tag = 'internal scratch']
  #allocation2 [shape = 'f32[16,32]{1,0:T(8,128)}', space=vmem, size = 0x2000, scoped, tag = 'scratch operand']
  #allocation3 [shape = 's32[1]{0}', space=sflag, size = 0x4, scoped, tag = 'scoped memory for moe_forward.3']
  #allocation4 [shape = 'u8[512]{0}', space=smem, size = 0x200, scoped, tag = 'prefetched SMEM operand 0']
  #allocation5 [shape = 'u8[512]{0}', space=smem, size = 0x200, scoped, tag = 'prefetched SMEM operand 1']
  #allocation6 [shape = 'u8[512]{0}', space=smem, size = 0x200, scoped, tag = 'prefetched SMEM operand 2']
  %s0 = inlined_call_operand.vmem [shape: s32[10], index: 0, kind: input, shape index: {}]
  %s1 = inlined_call_operand.vmem [shape: s32[10], index: 1, kind: input, shape index: {}]
  %s2 = inlined_call_operand.vmem [shape: s32[10], index: 2, kind: input, shape index: {}]
  %s3 = inlined_call_operand.vmem [shape: bf16[16,32], index: 3, kind: input, shape index: {}]
  %s4 = inlined_call_operand.vmem [shape: bf16[10,32,64], index: 4, kind: input, shape index: {}]
  %s5 = inlined_call_operand.vmem [shape: bf16[10,32,64], index: 5, kind: input, shape index: {}]
  %s6 = inlined_call_operand.vmem [shape: bf16[10,64,32], index: 6, kind: input, shape index: {}]
  %s7 = inlined_call_operand.vmem [shape: f32[10,16,1], index: 7, kind: input, shape index: {}]
  %s8 = inlined_call_operand.hbm [shape: f32[16,32], index: 8, kind: output, shape index: {}]
  %s9 = sld [smem:[#allocation0]]
  $region65: #{moe_forward.3} parent=0
    _
  %s11 = ssub.s32 1, %s9
  %s12 = scalar_select 0, %s11, %s9
  %s13 = sshll.u32 %s0, 4
  %s14 = int_to_ptr.vmem [resolvable:$true] %s13
  %16 = dma.vmem_to_smem %s14, 16, [#allocation4], [#allocation3]
  %s17 = sshll.u32 %s1, 4
  %s18 = int_to_ptr.vmem [resolvable:$true] %s17
  %20 = dma.vmem_to_smem %s18, 16, [#allocation5], [#allocation3]
  %s21 = sshll.u32 %s2, 4
  %s22 = int_to_ptr.vmem [resolvable:$true] %s21
  %24 = dma.vmem_to_smem %s22, 16, [#allocation6], [#allocation3]
  %25 = dma.done [#allocation3], 48
  %26 = sfence
  $region1: #{moe_forward.3} parent=0
    #allocation7 [shape = 'u8[8192]{0}', space=vmem, size = 0x2000, scoped, tag = 'output window, operand 0, single buffered']
    #allocation8 [shape = 's32[2]{0}', space=sflag, size = 0x8, scoped, tag = 'scoped memory for moe_forward.3']
    %27 = vsyncpa [#allocation8], 0
    loop: start=0, step=1, limit=12
    $region2: #{moe_forward.3} parent=1 // loop_pre_header
      _
    $region3: #{moe_forward.3} parent=1 // loop_header
      %s29 = sphi 0, %s33
      %p30 = scmp.ge.s32.totalorder %s29, 12
      %s36 = sphi 0, %s55
      %s37 = sphi 0, %s51
      %s38 = sphi 0, %s47
      %s39 = sphi 0, %s36
      %s40 = sphi 0, %s37
      %s41 = sphi 0, %s38
      %s42 = sphi 0, %s39
      %s43 = sphi 0, %s40
      %s44 = sphi 0, %s41
      %s58 = sphi 0, %s60
      %s61 = sphi 0, %s58
      %s62 = sphi 0, %s61
      %s78 = sphi 0, %s62
      %s100 = sphi 0, %s102
      %s103 = sphi 0, %s100
      %s104 = sphi 0, %s103
      %s120 = sphi 0, %s104
      %s142 = sphi 0, %s144
      %s145 = sphi 0, %s142
      %s146 = sphi 0, %s145
      %s162 = sphi 0, %s146
      %s184 = sphi 0, %s186
      %s187 = sphi 0, %s184
      %s188 = sphi 0, %s187
      %s204 = sphi 0, %s188
      %s212 = sphi 0, %s214
      %s215 = sphi 0, %s212
      %s216 = sphi 0, %s215
      %s232 = sphi 0, %s216
      %s238 = sphi 0, %s240
      %s241 = sphi 0, %s238
      %s242 = sphi 0, %s241
      %s258 = sphi 0, %s242
    $region4: #{moe_forward.3} parent=1 // loop_header_branch
      %32 = sbr.rel (%p30) target = $region8
    $region5: #{moe_forward.3} parent=1 // loop_body
      %s34 = ssub.s32 %s29, 1
      %s35 = ssub.s32 %s29, 2
      %s45 = sadd.s32 1, %s38
      %p46 = scmp.ge.s32.totalorder %s45, 1
      %s47 = scalar_select %p46, 0, %s45
      %s48 = sadd.s32 1, %s37
      %s49 = scalar_select %p46, %s48, %s37
      %p50 = scmp.ge.s32.totalorder %s49, 10
      %s51 = scalar_select %p50, 0, %s49
      %s52 = sadd.s32 1, %s36
      %s53 = scalar_select %p50, %s52, %s36
      %p54 = scmp.ge.s32.totalorder %s53, 1
      %s55 = scalar_select %p54, 0, %s53
      %s56 = ssub.s32 %s36, %s55
      %p57 = scmp.eq.s32.totalorder %s56, 0
      %s59 = sadd.s32 %s58, 1
      %s60 = scalar_select %p57, %s58, %s59
      %p63 = pneg %p57
      %p64 = scmp.eq.s32.totalorder %s29, 9
      %p65 = por %p63, %p64
      %p66 = scmp.ne.s32.totalorder %s58, %s61
      %p67 = scmp.eq.s32.totalorder %s29, 0
      %p68 = por %p66, %p67
      %p69 = scmp.ne.s32.totalorder %s58, %s61
      %p70 = scmp.eq.s32.totalorder %s34, 9
      %p71 = por %p69, %p70
      %p72 = scmp.ne.s32.totalorder %s61, %s62
      %p73 = scmp.eq.s32.totalorder %s34, 0
      %p74 = por %p72, %p73
      %p75 = scmp.ne.s32.totalorder %s61, %s62
      %p76 = scmp.eq.s32.totalorder %s35, 9
      %p77 = por %p75, %p76
      %p79 = scmp.ne.s32.totalorder %s62, %s78
      %p80 = scmp.eq.s32.totalorder %s35, 0
      %p81 = por %p79, %p80
      %s82 = smul.u32 %s36, 10
      %s83 = sadd.s32 %s82, %s37
      %s84 = sld [smem:[#allocation4 + %s83]]
      %s85 = sld [smem:[#allocation5 + %s83]]
      %s86 = smul.u32 %s85, %s38
      %s87 = sld [smem:[#allocation6 + %s83]]
      %s88 = sadd.s32 %s86, %s87
      %s89 = smul.u32 %s55, 10
      %s90 = sadd.s32 %s89, %s51
      %s91 = sld [smem:[#allocation4 + %s90]]
      %s92 = sld [smem:[#allocation5 + %s90]]
      %s93 = smul.u32 %s92, %s47
      %s94 = sld [smem:[#allocation6 + %s90]]
      %s95 = sadd.s32 %s93, %s94
      %s96 = ssub.s32 %s84, %s91
      %s97 = ssub.s32 %s88, %s95
      %s98 = sor.u32 %s96, %s97
      %p99 = scmp.eq.s32.totalorder %s98, 0
      %s101 = sadd.s32 %s100, 1
      %s102 = scalar_select %p99, %s100, %s101
      %p105 = pneg %p99
      %p106 = scmp.eq.s32.totalorder %s29, 9
      %p107 = por %p105, %p106
      %p108 = scmp.ne.s32.totalorder %s100, %s103
      %p109 = scmp.eq.s32.totalorder %s29, 0
      %p110 = por %p108, %p109
      %p111 = scmp.ne.s32.totalorder %s100, %s103
      %p112 = scmp.eq.s32.totalorder %s34, 9
      %p113 = por %p111, %p112
      %p114 = scmp.ne.s32.totalorder %s103, %s104
      %p115 = scmp.eq.s32.totalorder %s34, 0
      %p116 = por %p114, %p115
      %p117 = scmp.ne.s32.totalorder %s103, %s104
      %p118 = scmp.eq.s32.totalorder %s35, 9
      %p119 = por %p117, %p118
      %p121 = scmp.ne.s32.totalorder %s104, %s120
      %p122 = scmp.eq.s32.totalorder %s35, 0
      %p123 = por %p121, %p122
      %s124 = smul.u32 %s36, 10
      %s125 = sadd.s32 %s124, %s37
      %s126 = sld [smem:[#allocation4 + %s125]]
      %s127 = sld [smem:[#allocation5 + %s125]]
      %s128 = smul.u32 %s127, %s38
      %s129 = sld [smem:[#allocation6 + %s125]]
      %s130 = sadd.s32 %s128, %s129
      %s131 = smul.u32 %s55, 10
      %s132 = sadd.s32 %s131, %s51
      %s133 = sld [smem:[#allocation4 + %s132]]
      %s134 = sld [smem:[#allocation5 + %s132]]
      %s135 = smul.u32 %s134, %s47
      %s136 = sld [smem:[#allocation6 + %s132]]
      %s137 = sadd.s32 %s135, %s136
      %s138 = ssub.s32 %s126, %s133
      %s139 = ssub.s32 %s130, %s137
      %s140 = sor.u32 %s138, %s139
      %p141 = scmp.eq.s32.totalorder %s140, 0
      %s143 = sadd.s32 %s142, 1
      %s144 = scalar_select %p141, %s142, %s143
      %p147 = pneg %p141
      %p148 = scmp.eq.s32.totalorder %s29, 9
      %p149 = por %p147, %p148
      %p150 = scmp.ne.s32.totalorder %s142, %s145
      %p151 = scmp.eq.s32.totalorder %s29, 0
      %p152 = por %p150, %p151
      %p153 = scmp.ne.s32.totalorder %s142, %s145
      %p154 = scmp.eq.s32.totalorder %s34, 9
      %p155 = por %p153, %p154
      %p156 = scmp.ne.s32.totalorder %s145, %s146
      %p157 = scmp.eq.s32.totalorder %s34, 0
      %p158 = por %p156, %p157
      %p159 = scmp.ne.s32.totalorder %s145, %s146
      %p160 = scmp.eq.s32.totalorder %s35, 9
      %p161 = por %p159, %p160
      %p163 = scmp.ne.s32.totalorder %s146, %s162
      %p164 = scmp.eq.s32.totalorder %s35, 0
      %p165 = por %p163, %p164
      %s166 = smul.u32 %s36, 10
      %s167 = sadd.s32 %s166, %s37
      %s168 = sld [smem:[#allocation4 + %s167]]
      %s169 = sld [smem:[#allocation5 + %s167]]
      %s170 = smul.u32 %s169, %s38
      %s171 = sld [smem:[#allocation6 + %s167]]
      %s172 = sadd.s32 %s170, %s171
      %s173 = smul.u32 %s55, 10
      %s174 = sadd.s32 %s173, %s51
      %s175 = sld [smem:[#allocation4 + %s174]]
      %s176 = sld [smem:[#allocation5 + %s174]]
      %s177 = smul.u32 %s176, %s47
      %s178 = sld [smem:[#allocation6 + %s174]]
      %s179 = sadd.s32 %s177, %s178
      %s180 = ssub.s32 %s168, %s175
      %s181 = ssub.s32 %s172, %s179
      %s182 = sor.u32 %s180, %s181
      %p183 = scmp.eq.s32.totalorder %s182, 0
      %s185 = sadd.s32 %s184, 1
      %s186 = scalar_select %p183, %s184, %s185
      %p189 = pneg %p183
      %p190 = scmp.eq.s32.totalorder %s29, 9
      %p191 = por %p189, %p190
      %p192 = scmp.ne.s32.totalorder %s184, %s187
      %p193 = scmp.eq.s32.totalorder %s29, 0
      %p194 = por %p192, %p193
      %p195 = scmp.ne.s32.totalorder %s184, %s187
      %p196 = scmp.eq.s32.totalorder %s34, 9
      %p197 = por %p195, %p196
      %p198 = scmp.ne.s32.totalorder %s187, %s188
      %p199 = scmp.eq.s32.totalorder %s34, 0
      %p200 = por %p198, %p199
      %p201 = scmp.ne.s32.totalorder %s187, %s188
      %p202 = scmp.eq.s32.totalorder %s35, 9
      %p203 = por %p201, %p202
      %p205 = scmp.ne.s32.totalorder %s188, %s204
      %p206 = scmp.eq.s32.totalorder %s35, 0
      %p207 = por %p205, %p206
      %s208 = ssub.s32 %s37, %s51
      %s209 = ssub.s32 %s36, %s55
      %s210 = sor.u32 %s208, %s209
      %p211 = scmp.eq.s32.totalorder %s210, 0
      %s213 = sadd.s32 %s212, 1
      %s214 = scalar_select %p211, %s212, %s213
      %p217 = pneg %p211
      %p218 = scmp.eq.s32.totalorder %s29, 9
      %p219 = por %p217, %p218
      %p220 = scmp.ne.s32.totalorder %s212, %s215
      %p221 = scmp.eq.s32.totalorder %s29, 0
      %p222 = por %p220, %p221
      %p223 = scmp.ne.s32.totalorder %s212, %s215
      %p224 = scmp.eq.s32.totalorder %s34, 9
      %p225 = por %p223, %p224
      %p226 = scmp.ne.s32.totalorder %s215, %s216
      %p227 = scmp.eq.s32.totalorder %s34, 0
      %p228 = por %p226, %p227
      %p229 = scmp.ne.s32.totalorder %s215, %s216
      %p230 = scmp.eq.s32.totalorder %s35, 9
      %p231 = por %p229, %p230
      %p233 = scmp.ne.s32.totalorder %s216, %s232
      %p234 = scmp.eq.s32.totalorder %s35, 0
      %p235 = por %p233, %p234
      %s236 = ssub.s32 %s36, %s55
      %p237 = scmp.eq.s32.totalorder %s236, 0
      %s239 = sadd.s32 %s238, 1
      %s240 = scalar_select %p237, %s238, %s239
      %p243 = pneg %p237
      %p244 = scmp.eq.s32.totalorder %s29, 9
      %p245 = por %p243, %p244
      %p246 = scmp.ne.s32.totalorder %s238, %s241
      %p247 = scmp.eq.s32.totalorder %s29, 0
      %p248 = por %p246, %p247
      %p249 = scmp.ne.s32.totalorder %s238, %s241
      %p250 = scmp.eq.s32.totalorder %s34, 9
      %p251 = por %p249, %p250
      %p252 = scmp.ne.s32.totalorder %s241, %s242
      %p253 = scmp.eq.s32.totalorder %s34, 0
      %p254 = por %p252, %p253
      %p255 = scmp.ne.s32.totalorder %s241, %s242
      %p256 = scmp.eq.s32.totalorder %s35, 9
      %p257 = por %p255, %p256
      %p259 = scmp.ne.s32.totalorder %s242, %s258
      %p260 = scmp.eq.s32.totalorder %s35, 0
      %p261 = por %p259, %p260
      %p262 = scmp.le.s32.totalorder 1, %s29
      %p263 = scmp.lt.s32.totalorder %s29, 11
      %p264 = pnand %p262, %p263
      %p265 = pneg %p264
      // Predicated region
      $region9: #{moe_forward.3} parent=5 // pred_check
        _
      $region10: #{moe_forward.3} parent=5 // pred_check_branch
        %267 = sbr.rel (%p264) target = $region12
      $region11: #{moe_forward.3} parent=5 // pred_region
        %s268 = ssub.s32 %s29, 1
        // Predicated region
        $region13: #{moe_forward.3} parent=11 // pred_check
          %p269 = pneg %p74
        $region14: #{moe_forward.3} parent=11 // pred_check_branch
          %271 = sbr.rel (%p269) target = $region16
        $region15: #{moe_forward.3} parent=11 // pred_region
          %s272 = smul.u32 2, %s39
          %p273 = scmp.lt.s32.totalorder %s272, 1
          %s274 = scalar_select %p273, %s272, 1
          %s275 = smul.addr %s274, 4
          %s276 = scalar_lea.vmem %s3, %s275
          %s277 = smul.u32 2, %s39
        $region16: #{moe_forward.3} parent=11 // pred_fallthru
          _
      $region12: #{moe_forward.3} parent=5 // pred_fallthru
        _
      %p278 = scmp.lt.s32.totalorder %s29, 10
      // Predicated region
      $region17: #{moe_forward.3} parent=5 // pred_check
        %p279 = pneg %p278
      $region18: #{moe_forward.3} parent=5 // pred_check_branch
        %281 = sbr.rel (%p279) target = $region20
      $region19: #{moe_forward.3} parent=5 // pred_region
        // Predicated region
        $region21: #{moe_forward.3} parent=19 // pred_check
          %p282 = pneg %p110
        $region22: #{moe_forward.3} parent=19 // pred_check_branch
          %284 = sbr.rel (%p282) target = $region24
        $region23: #{moe_forward.3} parent=19 // pred_region
          %s285 = smul.u32 %s36, 10
          %s286 = sadd.s32 %s285, %s37
          %s287 = sld [smem:[#allocation4 + %s286]]
          %s288 = sld [smem:[#allocation5 + %s286]]
          %s289 = smul.u32 %s288, %s38
          %s290 = sld [smem:[#allocation6 + %s286]]
          %s291 = sadd.s32 %s289, %s290
          %p292 = scmp.lt.s32.totalorder %s287, 9
          %s293 = scalar_select %p292, %s287, 9
          %p294 = scmp.lt.s32.totalorder %s291, 0
          %s295 = scalar_select %p294, %s291, 0
          %s296 = smul.addr %s293, 4
          %s297 = sadd.s32 %s295, %s296
          %s298 = smul.addr %s297, 4
          %s299 = scalar_lea.vmem %s4, %s298
          %s300 = smul.u32 %s36, 10
          %s301 = sadd.s32 %s300, %s37
          %s302 = sld [smem:[#allocation4 + %s301]]
          %s303 = sld [smem:[#allocation5 + %s301]]
          %s304 = smul.u32 %s303, %s38
          %s305 = sld [smem:[#allocation6 + %s301]]
          %s306 = sadd.s32 %s304, %s305
        $region24: #{moe_forward.3} parent=19 // pred_fallthru
          _
        // Predicated region
        $region25: #{moe_forward.3} parent=19 // pred_check
          %p307 = pneg %p152
        $region26: #{moe_forward.3} parent=19 // pred_check_branch
          %309 = sbr.rel (%p307) target = $region28
        $region27: #{moe_forward.3} parent=19 // pred_region
          %s310 = smul.u32 %s36, 10
          %s311 = sadd.s32 %s310, %s37
          %s312 = sld [smem:[#allocation4 + %s311]]
          %s313 = sld [smem:[#allocation5 + %s311]]
          %s314 = smul.u32 %s313, %s38
          %s315 = sld [smem:[#allocation6 + %s311]]
          %s316 = sadd.s32 %s314, %s315
          %p317 = scmp.lt.s32.totalorder %s312, 9
          %s318 = scalar_select %p317, %s312, 9
          %p319 = scmp.lt.s32.totalorder %s316, 0
          %s320 = scalar_select %p319, %s316, 0
          %s321 = smul.addr %s318, 4
          %s322 = sadd.s32 %s320, %s321
          %s323 = smul.addr %s322, 4
          %s324 = scalar_lea.vmem %s5, %s323
          %s325 = smul.u32 %s36, 10
          %s326 = sadd.s32 %s325, %s37
          %s327 = sld [smem:[#allocation4 + %s326]]
          %s328 = sld [smem:[#allocation5 + %s326]]
          %s329 = smul.u32 %s328, %s38
          %s330 = sld [smem:[#allocation6 + %s326]]
          %s331 = sadd.s32 %s329, %s330
        $region28: #{moe_forward.3} parent=19 // pred_fallthru
          _
        // Predicated region
        $region29: #{moe_forward.3} parent=19 // pred_check
          %p332 = pneg %p194
        $region30: #{moe_forward.3} parent=19 // pred_check_branch
          %334 = sbr.rel (%p332) target = $region32
        $region31: #{moe_forward.3} parent=19 // pred_region
          %s335 = smul.u32 %s36, 10
          %s336 = sadd.s32 %s335, %s37
          %s337 = sld [smem:[#allocation4 + %s336]]
          %s338 = sld [smem:[#allocation5 + %s336]]
          %s339 = smul.u32 %s338, %s38
          %s340 = sld [smem:[#allocation6 + %s336]]
          %s341 = sadd.s32 %s339, %s340
          %s342 = smul.u32 8, %s341
          %p343 = scmp.lt.s32.totalorder %s337, 9
          %s344 = scalar_select %p343, %s337, 9
          %p345 = scmp.lt.s32.totalorder %s342, 7
          %s346 = scalar_select %p345, %s342, 7
          %s347 = smul.addr %s344, 8
          %s348 = sadd.s32 %s346, %s347
          %s349 = smul.addr %s348, 4
          %s350 = scalar_lea.vmem %s6, %s349
          %s351 = smul.u32 %s36, 10
          %s352 = sadd.s32 %s351, %s37
          %s353 = sld [smem:[#allocation4 + %s352]]
          %s354 = sld [smem:[#allocation5 + %s352]]
          %s355 = smul.u32 %s354, %s38
          %s356 = sld [smem:[#allocation6 + %s352]]
          %s357 = sadd.s32 %s355, %s356
          %s358 = smul.u32 8, %s357
        $region32: #{moe_forward.3} parent=19 // pred_fallthru
          _
        // Predicated region
        $region33: #{moe_forward.3} parent=19 // pred_check
          %p359 = pneg %p222
        $region34: #{moe_forward.3} parent=19 // pred_check_branch
          %361 = sbr.rel (%p359) target = $region36
        $region35: #{moe_forward.3} parent=19 // pred_region
          %s362 = smul.u32 2, %s36
          %p363 = scmp.lt.s32.totalorder %s37, 9
          %s364 = scalar_select %p363, %s37, 9
          %p365 = scmp.lt.s32.totalorder %s362, 1
          %s366 = scalar_select %p365, %s362, 1
          %s367 = smul.addr %s364, 2
          %s368 = sadd.s32 %s366, %s367
          %s369 = smul.addr %s368, 8
          %s370 = scalar_lea.vmem %s7, %s369
          %s371 = smul.u32 2, %s36
        $region36: #{moe_forward.3} parent=19 // pred_fallthru
          _
      $region20: #{moe_forward.3} parent=5 // pred_fallthru
        _
      %p372 = scmp.le.s32.totalorder 1, %s29
      %p373 = scmp.lt.s32.totalorder %s29, 11
      %p374 = pnand %p372, %p373
      %p375 = pneg %p374
      // Predicated region
      $region37: #{moe_forward.3} parent=5 // pred_check
        _
      $region38: #{moe_forward.3} parent=5 // pred_check_branch
        %377 = sbr.rel (%p374) target = $region40
      $region39: #{moe_forward.3} parent=5 // pred_region
        %s378 = ssub.s32 %s29, 1
        %s379 = smul.u32 2, %s39
        %p380 = scmp.lt.s32.totalorder %s379, 1
        %s381 = scalar_select %p380, %s379, 1
        %s382 = smul.addr %s381, 4
        %s383 = scalar_lea.vmem %s3, %s382
        %p384 = pneg %p74
        %p385 = pneg %p71
        %s386 = smul.u32 %s39, 10
        %s387 = sadd.s32 %s386, %s40
        %s388 = sld [smem:[#allocation4 + %s387]]
        %s389 = sld [smem:[#allocation5 + %s387]]
        %s390 = smul.u32 %s389, %s41
        %s391 = sld [smem:[#allocation6 + %s387]]
        %s392 = sadd.s32 %s390, %s391
        %p393 = scmp.lt.s32.totalorder %s388, 9
        %s394 = scalar_select %p393, %s388, 9
        %p395 = scmp.lt.s32.totalorder %s392, 0
        %s396 = scalar_select %p395, %s392, 0
        %s397 = smul.addr %s394, 4
        %s398 = sadd.s32 %s396, %s397
        %s399 = smul.addr %s398, 4
        %s400 = scalar_lea.vmem %s4, %s399
        %p401 = pneg %p116
        %p402 = pneg %p113
        %s403 = smul.u32 %s39, 10
        %s404 = sadd.s32 %s403, %s40
        %s405 = sld [smem:[#allocation4 + %s404]]
        %s406 = sld [smem:[#allocation5 + %s404]]
        %s407 = smul.u32 %s406, %s41
        %s408 = sld [smem:[#allocation6 + %s404]]
        %s409 = sadd.s32 %s407, %s408
        %p410 = scmp.lt.s32.totalorder %s405, 9
        %s411 = scalar_select %p410, %s405, 9
        %p412 = scmp.lt.s32.totalorder %s409, 0
        %s413 = scalar_select %p412, %s409, 0
        %s414 = smul.addr %s411, 4
        %s415 = sadd.s32 %s413, %s414
        %s416 = smul.addr %s415, 4
        %s417 = scalar_lea.vmem %s5, %s416
        %p418 = pneg %p158
        %p419 = pneg %p155
        %s420 = smul.u32 %s39, 10
        %s421 = sadd.s32 %s420, %s40
        %s422 = sld [smem:[#allocation4 + %s421]]
        %s423 = sld [smem:[#allocation5 + %s421]]
        %s424 = smul.u32 %s423, %s41
        %s425 = sld [smem:[#allocation6 + %s421]]
        %s426 = sadd.s32 %s424, %s425
        %s427 = smul.u32 8, %s426
        %p428 = scmp.lt.s32.totalorder %s422, 9
        %s429 = scalar_select %p428, %s422, 9
        %p430 = scmp.lt.s32.totalorder %s427, 7
        %s431 = scalar_select %p430, %s427, 7
        %s432 = smul.addr %s429, 8
        %s433 = sadd.s32 %s431, %s432
        %s434 = smul.addr %s433, 4
        %s435 = scalar_lea.vmem %s6, %s434
        %p436 = pneg %p200
        %p437 = pneg %p197
        %s438 = smul.u32 2, %s39
        %p439 = scmp.lt.s32.totalorder %s40, 9
        %s440 = scalar_select %p439, %s40, 9
        %p441 = scmp.lt.s32.totalorder %s438, 1
        %s442 = scalar_select %p441, %s438, 1
        %s443 = smul.addr %s440, 2
        %s444 = sadd.s32 %s442, %s443
        %s445 = smul.addr %s444, 8
        %s446 = scalar_lea.vmem %s7, %s445
        %p447 = pneg %p228
        %p448 = pneg %p225
        %p449 = pneg %p254
        %p450 = pneg %p251
        %s451 = smul.u32 2, %s39
        %p452 = scmp.lt.s32.totalorder %s451, 1
        %s453 = scalar_select %p452, %s451, 1
        %s454 = smul.addr %s453, 4
        %s455 = scalar_lea.vmem %s3, %s454
        %s456 = smul.u32 2, %s39
        %s457 = smul.u32 %s39, 10
        %s458 = sadd.s32 %s457, %s40
        %s459 = sld [smem:[#allocation4 + %s458]]
        %s460 = sld [smem:[#allocation5 + %s458]]
        %s461 = smul.u32 %s460, %s41
        %s462 = sld [smem:[#allocation6 + %s458]]
        %s463 = sadd.s32 %s461, %s462
        %p464 = scmp.lt.s32.totalorder %s459, 9
        %s465 = scalar_select %p464, %s459, 9
        %p466 = scmp.lt.s32.totalorder %s463, 0
        %s467 = scalar_select %p466, %s463, 0
        %s468 = smul.addr %s465, 4
        %s469 = sadd.s32 %s467, %s468
        %s470 = smul.addr %s469, 4
        %s471 = scalar_lea.vmem %s4, %s470
        %s472 = smul.u32 %s39, 10
        %s473 = sadd.s32 %s472, %s40
        %s474 = sld [smem:[#allocation4 + %s473]]
        %s475 = sld [smem:[#allocation5 + %s473]]
        %s476 = smul.u32 %s475, %s41
        %s477 = sld [smem:[#allocation6 + %s473]]
        %s478 = sadd.s32 %s476, %s477
        %s479 = smul.u32 %s39, 10
        %s480 = sadd.s32 %s479, %s40
        %s481 = sld [smem:[#allocation4 + %s480]]
        %s482 = sld [smem:[#allocation5 + %s480]]
        %s483 = smul.u32 %s482, %s41
        %s484 = sld [smem:[#allocation6 + %s480]]
        %s485 = sadd.s32 %s483, %s484
        %p486 = scmp.lt.s32.totalorder %s481, 9
        %s487 = scalar_select %p486, %s481, 9
        %p488 = scmp.lt.s32.totalorder %s485, 0
        %s489 = scalar_select %p488, %s485, 0
        %s490 = smul.addr %s487, 4
        %s491 = sadd.s32 %s489, %s490
        %s492 = smul.addr %s491, 4
        %s493 = scalar_lea.vmem %s5, %s492
        %s494 = smul.u32 %s39, 10
        %s495 = sadd.s32 %s494, %s40
        %s496 = sld [smem:[#allocation4 + %s495]]
        %s497 = sld [smem:[#allocation5 + %s495]]
        %s498 = smul.u32 %s497, %s41
        %s499 = sld [smem:[#allocation6 + %s495]]
        %s500 = sadd.s32 %s498, %s499
        %s501 = smul.u32 %s39, 10
        %s502 = sadd.s32 %s501, %s40
        %s503 = sld [smem:[#allocation4 + %s502]]
        %s504 = sld [smem:[#allocation5 + %s502]]
        %s505 = smul.u32 %s504, %s41
        %s506 = sld [smem:[#allocation6 + %s502]]
        %s507 = sadd.s32 %s505, %s506
        %s508 = smul.u32 8, %s507
        %p509 = scmp.lt.s32.totalorder %s503, 9
        %s510 = scalar_select %p509, %s503, 9
        %p511 = scmp.lt.s32.totalorder %s508, 7
        %s512 = scalar_select %p511, %s508, 7
        %s513 = smul.addr %s510, 8
        %s514 = sadd.s32 %s512, %s513
        %s515 = smul.addr %s514, 4
        %s516 = scalar_lea.vmem %s6, %s515
        %s517 = smul.u32 %s39, 10
        %s518 = sadd.s32 %s517, %s40
        %s519 = sld [smem:[#allocation4 + %s518]]
        %s520 = sld [smem:[#allocation5 + %s518]]
        %s521 = smul.u32 %s520, %s41
        %s522 = sld [smem:[#allocation6 + %s518]]
        %s523 = sadd.s32 %s521, %s522
        %s524 = smul.u32 8, %s523
        %s525 = smul.u32 2, %s39
        %p526 = scmp.lt.s32.totalorder %s40, 9
        %s527 = scalar_select %p526, %s40, 9
        %p528 = scmp.lt.s32.totalorder %s525, 1
        %s529 = scalar_select %p528, %s525, 1
        %s530 = smul.addr %s527, 2
        %s531 = sadd.s32 %s529, %s530
        %s532 = smul.addr %s531, 8
        %s533 = scalar_lea.vmem %s7, %s532
        %s534 = smul.u32 2, %s39
        %s535 = smul.u32 2, %s39
        %p537 = scmp.eq.s32.totalorder %s40, 0
        %p538 = scmp.eq.s32.totalorder %s41, 0
        %p539 = pnand %p537, %p538
        %p540 = pneg %p539
        // Predicated region
        $region41: #{moe_forward.3} parent=39 // pred_check
          _
        $region42: #{moe_forward.3} parent=39 // pred_check_branch
          %542 = sbr.rel (%p539) target = $region44
        $region43: #{moe_forward.3} parent=39 // pred_region
          %vm543 = vcmask 261120
          %544 = vst.msk [vmem:[#allocation2] sm:$0xff] %vm543, 0.0
          %545 = vst.msk [vmem:[#allocation2 + $0x8] sm:$0xff] %vm543, 0.0
        $region44: #{moe_forward.3} parent=39 // pred_fallthru
          _
        %s546 = smul.u32 %s39, 10
        %s547 = sadd.s32 %s546, %s40
        %s548 = sld [smem:[#allocation5 + %s547]]
        %p549 = scmp.gt.s32.totalorder %s548, 0
        // Predicated region
        $region45: #{moe_forward.3} parent=39 // pred_check
          %p550 = pneg %p549
        $region46: #{moe_forward.3} parent=39 // pred_check_branch
          %552 = sbr.rel (%p550) target = $region48
        $region47: #{moe_forward.3} parent=39 // pred_region
          %v553 = vld [vmem:[%s455] sm:$0xf]
          %v554 = vld [vmem:[%s455 + $0x4] sm:$0xf]
          %v555 = vld [vmem:[%s471] sm:$0xf]
          %v556 = vld [vmem:[%s471 + $0x4] sm:$0xf]
          %v557 = vld [vmem:[%s471 + $0x8] sm:$0xf]
          %v558 = vld [vmem:[%s471 + $0xc] sm:$0xf]
          %v561 = vunpack.c.l.b16 %v553
          %v562 = vunpack.c.l.b16 %v554
          %v563 = vpack.c.b16 %v562, %v561
          %v568 = vunpack.c.l.b16 %v555
          %v569 = vunpack.c.l.b16 %v556
          %v570 = vunpack.c.l.b16 %v557
          %v571 = vunpack.c.l.b16 %v558
          %v572 = vpack.c.b16 %v569, %v568
          %v573 = vpack.c.b16 %v571, %v570
          %vm576 = vcmask 261120
          %v578 = vsel %vm576, %v563, 0
          %580 = vmatprep.subr.bf16.mxu0 0
          %581 = vmatpush1.bf16.msra.mxu0 0
          %582 = vmatprep.subr.bf16.mxu0 0
          %583 = vmatpush1.bf16.msra.mxu0 0
          %584 = vmatprep.subr.bf16.mxu0 0
          %585 = vmatpush1.bf16.msra.mxu0 0
          %586 = vmatprep.subr.bf16.mxu0 0
          %587 = vmatpush1.bf16.msra.mxu0 0
          %588 = vmatprep.subr.bf16.mxu0 0
          %589 = vmatpush1.bf16.msra.mxu0 0
          %590 = vmatprep.subr.bf16.mxu0 0
          %591 = vmatpush1.bf16.msra.mxu0 0
          %592 = vmatprep.subr.bf16.mxu0 0
          %593 = vmatpush1.bf16.msra.mxu0 %v573
          %594 = vmatprep.subr.bf16.mxu0 0
          %595 = vmatpush1.bf16.msra.mxu0 %v572
          %596 = vmatprep.subr.bf16.mxu0 0
          %597 = vmatpush2.bf16.msra.mxu0 0
          %598 = vmatprep.subr.bf16.mxu0 0
          %599 = vmatpush2.bf16.msra.mxu0 0
          %600 = vmatprep.subr.bf16.mxu0 0
          %601 = vmatpush2.bf16.msra.mxu0 0
          %602 = vmatprep.subr.bf16.mxu0 0
          %603 = vmatpush2.bf16.msra.mxu0 0
          %604 = vmatprep.subr.bf16.mxu0 0
          %605 = vmatpush2.bf16.msra.mxu0 0
          %606 = vmatprep.subr.bf16.mxu0 0
          %607 = vmatpush2.bf16.msra.mxu0 0
          %608 = vmatprep.subr.bf16.mxu0 0
          %609 = vmatpush2.bf16.msra.mxu0 0
          %610 = vmatprep.subr.bf16.mxu0 0
          %611 = vmatpush2.bf16.msra.mxu0 0
          %612 = vmatprep.mubr.bf16.mxu0 0
          %613 = vmatmul.mubr.bf16.gmra.mxu0 %v578
          %v614 = vpop.f32.mrf.mxu0
          %v615 = vadd.f32 0.0, %v614
          %v616 = vpop.f32.mrf.mxu0
          %v617 = vpop.f32.mrf.mxu0
          %v618 = vadd.f32 0.0, %v617
          %v619 = vpop.f32.mrf.mxu0
          %620 = vdwg.mxu0
          %v621 = vld [vmem:[%s493] sm:$0xf]
          %v622 = vld [vmem:[%s493 + $0x4] sm:$0xf]
          %v623 = vld [vmem:[%s493 + $0x8] sm:$0xf]
          %v624 = vld [vmem:[%s493 + $0xc] sm:$0xf]
          %v629 = vunpack.c.l.b16 %v621
          %v630 = vunpack.c.l.b16 %v622
          %v631 = vunpack.c.l.b16 %v623
          %v632 = vunpack.c.l.b16 %v624
          %v633 = vpack.c.b16 %v630, %v629
          %v634 = vpack.c.b16 %v632, %v631
          %637 = vmatprep.subr.bf16.mxu0 0
          %638 = vmatpush1.bf16.msra.mxu0 0
          %639 = vmatprep.subr.bf16.mxu0 0
          %640 = vmatpush1.bf16.msra.mxu0 0
          %641 = vmatprep.subr.bf16.mxu0 0
          %642 = vmatpush1.bf16.msra.mxu0 0
          %643 = vmatprep.subr.bf16.mxu0 0
          %644 = vmatpush1.bf16.msra.mxu0 0
          %645 = vmatprep.subr.bf16.mxu0 0
          %646 = vmatpush1.bf16.msra.mxu0 0
          %647 = vmatprep.subr.bf16.mxu0 0
          %648 = vmatpush1.bf16.msra.mxu0 0
          %649 = vmatprep.subr.bf16.mxu0 0
          %650 = vmatpush1.bf16.msra.mxu0 %v634
          %651 = vmatprep.subr.bf16.mxu0 0
          %652 = vmatpush1.bf16.msra.mxu0 %v633
          %653 = vmatprep.subr.bf16.mxu0 0
          %654 = vmatpush2.bf16.msra.mxu0 0
          %655 = vmatprep.subr.bf16.mxu0 0
          %656 = vmatpush2.bf16.msra.mxu0 0
          %657 = vmatprep.subr.bf16.mxu0 0
          %658 = vmatpush2.bf16.msra.mxu0 0
          %659 = vmatprep.subr.bf16.mxu0 0
          %660 = vmatpush2.bf16.msra.mxu0 0
          %661 = vmatprep.subr.bf16.mxu0 0
          %662 = vmatpush2.bf16.msra.mxu0 0
          %663 = vmatprep.subr.bf16.mxu0 0
          %664 = vmatpush2.bf16.msra.mxu0 0
          %665 = vmatprep.subr.bf16.mxu0 0
          %666 = vmatpush2.bf16.msra.mxu0 0
          %667 = vmatprep.subr.bf16.mxu0 0
          %668 = vmatpush2.bf16.msra.mxu0 0
          %669 = vmatprep.mubr.bf16.mxu0 0
          %670 = vmatmul.mubr.bf16.gmra.mxu0 %v578
          %v671 = vpop.f32.mrf.mxu0
          %v672 = vadd.f32 0.0, %v671
          %v673 = vpop.f32.mrf.mxu0
          %v674 = vpop.f32.mrf.mxu0
          %v675 = vadd.f32 0.0, %v674
          %v676 = vpop.f32.mrf.mxu0
          %677 = vdwg.mxu0
          %v678 = vxor.u32 %v615, 2147483648
          %v679 = vxor.u32 %v618, 2147483648
          %v680 = vmul.f32 %v678, 1.442695
          %v681 = vpow.pop %v680
          %v682 = vmul.f32 %v679, 1.442695
          %v683 = vpow.pop %v682
          %v684 = vadd.f32 %v681, 1.0
          %v685 = vadd.f32 %v683, 1.0
          %v686 = vrcp.pop %v684
          %v687 = vmul.f32 1.0, %v686
          %v688 = vrcp.pop %v685
          %v689 = vmul.f32 1.0, %v688
          %v690 = vmul.f32 %v615, %v687
          %v691 = vmul.f32 %v618, %v689
          %v692 = vmul.f32 %v690, %v672
          %v693 = vmul.f32 %v691, %v675
          %v694 = vld [vmem:[%s533] sm:$0xff]
          %v695 = vld [vmem:[%s533 + $0x8] sm:$0xff]
          %697 = vset.pattern.permute.xlu0 0
          %698 = vperm.xlu0 %697, %v694
          %v699 = vpop.permute.xlu0 %698
          %702 = vset.pattern.permute.xlu0 0
          %703 = vperm.xlu0 %702, %v695
          %v704 = vpop.permute.xlu0 %703
          %v706 = vmul.f32 %v692, %v699
          %v707 = vmul.f32 %v693, %v704
          %v708 = vpack.c.bf16 %v707, %v706
          %v709 = vld [vmem:[#allocation2] sm:$0xff]
          %v710 = vld [vmem:[#allocation2 + $0x8] sm:$0xff]
          %v711 = vld [vmem:[%s516] sm:$0xf]
          %v712 = vld [vmem:[%s516 + $0x4] sm:$0xf]
          %v713 = vld [vmem:[%s516 + $0x8] sm:$0xf]
          %v714 = vld [vmem:[%s516 + $0xc] sm:$0xf]
          %v715 = vld [vmem:[%s516 + $0x10] sm:$0xf]
          %v716 = vld [vmem:[%s516 + $0x14] sm:$0xf]
          %v717 = vld [vmem:[%s516 + $0x18] sm:$0xf]
          %v718 = vld [vmem:[%s516 + $0x1c] sm:$0xf]
          %v727 = vunpack.c.l.b16 %v711
          %v728 = vunpack.c.l.b16 %v712
          %v729 = vunpack.c.l.b16 %v713
          %v730 = vunpack.c.l.b16 %v714
          %v731 = vunpack.c.l.b16 %v715
          %v732 = vunpack.c.l.b16 %v716
          %v733 = vunpack.c.l.b16 %v717
          %v734 = vunpack.c.l.b16 %v718
          %v735 = vpack.c.b16 %v728, %v727
          %v736 = vpack.c.b16 %v730, %v729
          %v737 = vpack.c.b16 %v732, %v731
          %v738 = vpack.c.b16 %v734, %v733
          %vm743 = vcmask 523264
          %v745 = vsel %vm743, %v708, 0
          %747 = vmatprep.subr.bf16.mxu0 0
          %748 = vmatpush1.bf16.msra.mxu0 0
          %749 = vmatprep.subr.bf16.mxu0 0
          %750 = vmatpush1.bf16.msra.mxu0 0
          %751 = vmatprep.subr.bf16.mxu0 0
          %752 = vmatpush1.bf16.msra.mxu0 0
          %753 = vmatprep.subr.bf16.mxu0 0
          %754 = vmatpush1.bf16.msra.mxu0 0
          %755 = vmatprep.subr.bf16.mxu0 0
          %756 = vmatpush1.bf16.msra.mxu0 %v738
          %757 = vmatprep.subr.bf16.mxu0 0
          %758 = vmatpush1.bf16.msra.mxu0 %v737
          %759 = vmatprep.subr.bf16.mxu0 0
          %760 = vmatpush1.bf16.msra.mxu0 %v736
          %761 = vmatprep.subr.bf16.mxu0 0
          %762 = vmatpush1.bf16.msra.mxu0 %v735
          %763 = vmatprep.subr.bf16.mxu0 0
          %764 = vmatpush2.bf16.msra.mxu0 0
          %765 = vmatprep.subr.bf16.mxu0 0
          %766 = vmatpush2.bf16.msra.mxu0 0
          %767 = vmatprep.subr.bf16.mxu0 0
          %768 = vmatpush2.bf16.msra.mxu0 0
          %769 = vmatprep.subr.bf16.mxu0 0
          %770 = vmatpush2.bf16.msra.mxu0 0
          %771 = vmatprep.subr.bf16.mxu0 0
          %772 = vmatpush2.bf16.msra.mxu0 0
          %773 = vmatprep.subr.bf16.mxu0 0
          %774 = vmatpush2.bf16.msra.mxu0 0
          %775 = vmatprep.subr.bf16.mxu0 0
          %776 = vmatpush2.bf16.msra.mxu0 0
          %777 = vmatprep.subr.bf16.mxu0 0
          %778 = vmatpush2.bf16.msra.mxu0 0
          %779 = vmatprep.mubr.bf16.mxu0 0
          %780 = vmatmul.mubr.bf16.gmra.mxu0 %v745
          %v781 = vpop.f32.mrf.mxu0
          %v782 = vadd.f32 0.0, %v781
          %v783 = vpop.f32.mrf.mxu0
          %v784 = vpop.f32.mrf.mxu0
          %v785 = vadd.f32 0.0, %v784
          %v786 = vpop.f32.mrf.mxu0
          %787 = vdwg.mxu0
          %v788 = vadd.f32 %v709, %v782
          %v789 = vadd.f32 %v710, %v785
          %790 = vst.msk [vmem:[#allocation2] sm:$0xff] %vm576, %v788
          %791 = vst.msk [vmem:[#allocation2 + $0x8] sm:$0xff] %vm576, %v789
        $region48: #{moe_forward.3} parent=39 // pred_fallthru
          _
        %p792 = scmp.eq.s32.totalorder %s40, 9
        %p793 = pnand %p792, %p538
        %p794 = pneg %p793
        // Predicated region
        $region49: #{moe_forward.3} parent=39 // pred_check
          _
        $region50: #{moe_forward.3} parent=39 // pred_check_branch
          %796 = sbr.rel (%p793) target = $region52
        $region51: #{moe_forward.3} parent=39 // pred_region
          %v797 = vld [vmem:[#allocation2] sm:$0xff]
          %v798 = vld [vmem:[#allocation2 + $0x8] sm:$0xff]
          %vm799 = vcmask 261120
          %800 = vst.msk [vmem:[#allocation7] sm:$0xff] %vm799, %v797
          %801 = vst.msk [vmem:[#allocation7 + $0x8] sm:$0xff] %vm799, %v798
        $region52: #{moe_forward.3} parent=39 // pred_fallthru
          _
        // Predicated region
        $region53: #{moe_forward.3} parent=39 // pred_check
          %p802 = pneg %p251
        $region54: #{moe_forward.3} parent=39 // pred_check_branch
          %804 = sbr.rel (%p802) target = $region56
        $region55: #{moe_forward.3} parent=39 // pred_region
          %s805 = smul.u32 2, %s39
          %s807 = ssub.s32 256, 256
          %808 = vsyncadd [#allocation8], %s807
          %s809 = smul.addr %s805, 128
          %s810 = scalar_lea.hbm %s8, %s809
          %s811 = sshll.u32 [#allocation7], 4
          %s812 = int_to_ptr.vmem [resolvable:$true] %s811
          %817 = dma.vmem_to_hbm [thread:$0]  %s812, 256, %s810, [#allocation8], 128, 128, 8
        $region56: #{moe_forward.3} parent=39 // pred_fallthru
          _
        // Predicated region
        $region57: #{moe_forward.3} parent=39 // pred_check
          %p818 = pneg %p251
        $region58: #{moe_forward.3} parent=39 // pred_check_branch
          %820 = sbr.rel (%p818) target = $region60
        $region59: #{moe_forward.3} parent=39 // pred_region
          %821 = dma.done [#allocation8], 256
        $region60: #{moe_forward.3} parent=39 // pred_fallthru
          _
      $region40: #{moe_forward.3} parent=5 // pred_fallthru
        _
      %p822 = scmp.le.s32.totalorder 2, %s29
      // Predicated region
      $region61: #{moe_forward.3} parent=5 // pred_check
        %p823 = pneg %p822
      $region62: #{moe_forward.3} parent=5 // pred_check_branch
        %825 = sbr.rel (%p823) target = $region64
      $region63: #{moe_forward.3} parent=5 // pred_region
        %s826 = ssub.s32 %s29, 2
      $region64: #{moe_forward.3} parent=5 // pred_fallthru
        _
    $region6: #{moe_forward.3} parent=1 // loop_footer
      %s33 = sadd.s32 1, %s29
    $region7: #{moe_forward.3} parent=1 // loop_footer_branch
      %28 = sbr.rel target = $region3
    $region8: #{moe_forward.3} parent=1 // loop_exit
      _
    %827 = vsyncpa [#allocation8], 1
    %s828 = scalar_lea.sflag [#allocation8], 1
    %829 = vsyncpa %s828, 1

</llo_original>
